<compile_context>
chip_gen: v7x
topology: tpu7x:2x2x1
jax: 0.10.0
libtpu: 0.0.40
codegen_flags: <defaults>
</compile_context>

<pallas_src>
import numpy as np
import jax
import jax.numpy as jnp
from jax.experimental import pallas as pl
from jax.experimental.pallas import tpu as pltpu

_LANE = 512          # lanes per slab row (multiple of 128 -> unmasked vst)
_MAX_TILE_R = 512    # rows per grid step -> up to 512*512*4B = 1 MiB / block


# ----------------------------- kernels -------------------------------------

def _blend2_kernel(coef_ref, a_ref, b_ref, o_ref):
    # coef_ref: (2,) f32 in SMEM
    o_ref[...] = coef_ref[0] * a_ref[...] + coef_ref[1] * b_ref[...]


def _blend3_kernel(coef_ref, a_ref, b_ref, c_ref, o_ref):
    # coef_ref: (3,) f32 in SMEM
    o_ref[...] = (coef_ref[0] * a_ref[...]
                  + coef_ref[1] * b_ref[...]
                  + coef_ref[2] * c_ref[...])


# --------------------------- slab utilities ---------------------------------

def _round_up(x, m):
    return ((x + m - 1) // m) * m


def _slab_geometry(n):
    """Rows / row-tile for n flat elements packed into an (R, _LANE) slab."""
    rows = max(1, (n + _LANE - 1) // _LANE)
    rows = _round_up(rows, 8)                      # sublane alignment
    if rows <= _MAX_TILE_R:
        tile_r = rows                              # single block == full slab
    else:
        tile_r = _MAX_TILE_R
        rows = _round_up(rows, tile_r)
    return rows, tile_r


def _pack(tensors):
    """Concatenate all tensors, flatten, pad, reshape to (R, _LANE) f32 slab."""
    flats = [jnp.asarray(p, jnp.float32).reshape(-1) for p in tensors]
    flat = jnp.concatenate(flats) if len(flats) > 1 else flats[0]
    n = int(flat.shape[0])
    rows, tile_r = _slab_geometry(n)
    flat = jnp.pad(flat, (0, rows * _LANE - n))
    return flat.reshape(rows, _LANE), n, tile_r


def _blend_slabs(coefs, *slabs):
    """out = sum_i coefs[i] * slabs[i], elementwise, in ONE pallas_call."""
    assert len(slabs) in (2, 3)
    R, L = slabs[0].shape
    tile_r = min(_MAX_TILE_R, R)
    assert R % tile_r == 0
    grid = (R // tile_r,)
    coefs = jnp.asarray(coefs, jnp.float32)
    kernel = _blend2_kernel if len(slabs) == 2 else _blend3_kernel

    return pl.pallas_call(
        kernel,
        out_shape=jax.ShapeDtypeStruct((R, L), jnp.float32),
        grid=grid,
        in_specs=[pl.BlockSpec(memory_space=pltpu.SMEM)]            # coefs
        + [pl.BlockSpec((tile_r, L), lambda i: (i, 0)) for _ in slabs],
        out_specs=pl.BlockSpec((tile_r, L), lambda i: (i, 0)),
        compiler_params=pltpu.CompilerParams(
            dimension_semantics=("parallel",),        # megacore shard on v7x
            vmem_limit_bytes=32 * 1024 * 1024),       # headroom on all gens
    )(coefs, *slabs)


# ------------------------------ module --------------------------------------

class BezierCurvePallas:
    """JAX/Pallas re-implementation of the PyTorch BezierCurve module.

    All parameters are kept as one persistent, pre-padded (R, 512) f32 slab;
    forward()/tangent() issue a single 3-operand blend pallas_call and only
    un-pad / reshape when returning the per-parameter list.
    """

    def __init__(self, start, stop, **kwargs):
        for p1, p2 in zip(start, stop):
            assert tuple(p1.shape) == tuple(p2.shape)
        assert len(start) == len(stop)
        self.eps = 0.01
        self.lambd = 0.5
        self.shapes = [tuple(np.asarray(p).shape) for p in stop]
        self.sizes = [int(np.prod(s)) if len(s) > 0 else 1 for s in self.shapes]

        # Pack endpoints once; they stay resident in slab form.
        self.start_slab, self.total, self.tile_r = _pack(start)
        self.stop_slab, total2, _ = _pack(stop)
        assert total2 == self.total
        self.bend_slab = None
        self.initialize()

    def initialize(self):
        # bend = lambd * p1 + lambd * p2  (2-operand blend, no dummy operand)
        self.bend_slab = _blend_slabs((self.lambd, self.lambd),
                                      self.start_slab, self.stop_slab)

    def _unpack(self, slab):
        flat = slab.reshape(-1)[: self.total]
        params, off = [], 0
        for shp, sz in zip(self.shapes, self.sizes):
            params.append(flat[off:off + sz].reshape(shp))
            off += sz
        return params

    # correct_shape: _unpack already reshapes every chunk to stop's shape.

    def forward(self, t):
        t = float(t)
        coefs = ((1.0 - t) ** 2, 2.0 * t * (1.0 - t), t ** 2)
        out_slab = _blend_slabs(coefs, self.start_slab, self.bend_slab,
                                self.stop_slab)
        return self._unpack(out_slab)

    def tangent(self, t):
        t = float(t)
        coefs = (-2.0 + 2.0 * t, 2.0 * (1.0 - 2.0 * t), 2.0 * t)
        out_slab = _blend_slabs(coefs, self.start_slab, self.bend_slab,
                                self.stop_slab)
        return self._unpack(out_slab)


# ------------------------------- test ---------------------------------------

if __name__ == "__main__":
    np.random.seed(0)
    key = jax.random.PRNGKey(0)

    # Small synthetic "model" parameter lists (start / stop checkpoints):
    # a conv weight (OIHW), its bias, a linear weight and its bias.
    shapes = [(4, 4, 3, 3), (4,), (8, 32), (8,)]
    keys = jax.random.split(key, 2 * len(shapes))
    start = [jax.random.normal(keys[2 * i], s, jnp.float32)
             for i, s in enumerate(shapes)]
    stop = [jax.random.normal(keys[2 * i + 1], s, jnp.float32)
            for i, s in enumerate(shapes)]

    model = BezierCurvePallas(start, stop)

    # Reference bend parameters (lambd = 0.5).
    theta_ref = [0.5 * p1 + 0.5 * p2 for p1, p2 in zip(start, stop)]

    # --- forward(t) ---
    t = 0.3
    out = model.forward(t)
    jax.block_until_ready(out)
    ref = [p1 * (1 - t) ** 2 + th * 2 * t * (1 - t) + p2 * t ** 2
           for p1, th, p2 in zip(start, theta_ref, stop)]
    for o, r in zip(out, ref):
        assert o.shape == r.shape
        np.testing.assert_allclose(np.asarray(o), np.asarray(r),
                                   rtol=1e-5, atol=1e-5)

    # --- forward at a second t (same compiled kernel; coefs live in SMEM) ---
    t2 = 0.75
    out2 = model.forward(t2)
    jax.block_until_ready(out2)
    ref2 = [p1 * (1 - t2) ** 2 + th * 2 * t2 * (1 - t2) + p2 * t2 ** 2
            for p1, th, p2 in zip(start, theta_ref, stop)]
    for o, r in zip(out2, ref2):
        np.testing.assert_allclose(np.asarray(o), np.asarray(r),
                                   rtol=1e-5, atol=1e-5)

    # --- tangent(t) ---
    tg = model.tangent(t)
    jax.block_until_ready(tg)
    tg_ref = [p1 * (-2 + 2 * t) + th * 2 * (1 - 2 * t) + p2 * 2 * t
              for p1, th, p2 in zip(start, theta_ref, stop)]
    for o, r in zip(tg, tg_ref):
        assert o.shape == r.shape
        np.testing.assert_allclose(np.asarray(o), np.asarray(r),
                                   rtol=1e-5, atol=1e-5)

    print("KERNEL_OK")
</pallas_src>

<mosaic_0001>
module attributes {stable_mosaic.version = 11 : i64} {
  func.func @_blend2_kernel(%arg0: i32, %arg1: memref<2xf32, #tpu.memory_space<smem>>, %arg2: memref<8x512xf32, #tpu.memory_space<vmem>>, %arg3: memref<8x512xf32, #tpu.memory_space<vmem>>, %arg4: memref<8x512xf32, #tpu.memory_space<vmem>>) attributes {dimension_semantics = [#tpu.dimension_semantics<parallel>], iteration_bounds = array<i64: 1>, scalar_prefetch = 0 : i64, scratch_operands = 0 : i64, tpu.core_type = #tpu.core_type<tc>, window_params = [{transform_indices = @transform_0, window_bounds = array<i64: 2>}, {transform_indices = @transform_1, window_bounds = array<i64: 8, 512>}, {transform_indices = @transform_2, window_bounds = array<i64: 8, 512>}, {transform_indices = @transform_3, window_bounds = array<i64: 8, 512>}]} {
    %c0 = arith.constant 0 : index
    %0 = memref.load %arg1[%c0] : memref<2xf32, #tpu.memory_space<smem>>
    %c0_0 = arith.constant 0 : index
    %c0_1 = arith.constant 0 : index
    %1 = vector.load %arg2[%c0_0, %c0_1] : memref<8x512xf32, #tpu.memory_space<vmem>>, vector<8x512xf32>
    %2 = vector.broadcast %0 : f32 to vector<8x512xf32>
    %3 = arith.mulf %2, %1 : vector<8x512xf32>
    %c1 = arith.constant 1 : index
    %4 = memref.load %arg1[%c1] : memref<2xf32, #tpu.memory_space<smem>>
    %c0_2 = arith.constant 0 : index
    %c0_3 = arith.constant 0 : index
    %5 = vector.load %arg3[%c0_2, %c0_3] : memref<8x512xf32, #tpu.memory_space<vmem>>, vector<8x512xf32>
    %6 = vector.broadcast %4 : f32 to vector<8x512xf32>
    %7 = arith.mulf %6, %5 : vector<8x512xf32>
    %8 = arith.addf %3, %7 : vector<8x512xf32>
    %c0_4 = arith.constant 0 : index
    %c0_5 = arith.constant 0 : index
    %9 = vector.load %arg4[%c0_4, %c0_5] : memref<8x512xf32, #tpu.memory_space<vmem>>, vector<8x512xf32>
    tpu.vector_store %arg4[%c0_4, %c0_5], %8 {strides = array<i32>} : memref<8x512xf32, #tpu.memory_space<vmem>>, vector<8x512xf32>,
    return
  }
  func.func @transform_0(%arg0: i32) -> i32 {
    %c0_i32 = arith.constant 0 : i32
    %c0_i32_0 = arith.constant 0 : i32
    return %c0_i32 : i32
  }
  func.func @transform_1(%arg0: i32) -> (i32, i32) {
    %c0_i32 = arith.constant 0 : i32
    %c0_i32_0 = arith.constant 0 : i32
    return %arg0, %c0_i32 : i32, i32
  }
  func.func @transform_2(%arg0: i32) -> (i32, i32) {
    %c0_i32 = arith.constant 0 : i32
    %c0_i32_0 = arith.constant 0 : i32
    return %arg0, %c0_i32 : i32, i32
  }
  func.func @transform_3(%arg0: i32) -> (i32, i32) {
    %c0_i32 = arith.constant 0 : i32
    %c0_i32_0 = arith.constant 0 : i32
    return %arg0, %c0_i32 : i32, i32
  }
}

</mosaic_0001>

<llo_original>
// kernel: tpu_custom_call.1
$region0: #{tpu_custom_call.1}
  #allocation0 [shape = 'u32[]', space=smem, size = 0x4, offset = 0x4, fixed_abs, tag = 'smem constant byte address 0x4 - core index']
  #allocation1 [shape = 'u32[144,128]{1,0:T(1,128)}', space=vmem, size = 0x12000, scoped, tag = 'internal scratch']
  %s0 = inlined_call_operand.hbm [shape: f32[2], index: 0, kind: input, shape index: {}]
  %s1 = inlined_call_operand.hbm [shape: f32[8,512], index: 1, kind: input, shape index: {}]
  %s2 = inlined_call_operand.hbm [shape: f32[8,512], index: 2, kind: input, shape index: {}]
  %s3 = inlined_call_operand.hbm [shape: f32[8,512], index: 3, kind: output, shape index: {}]
  %s4 = sld [smem:[#allocation0]]
  $region34: #{tpu_custom_call.1} parent=0
    _
  %s6 = ssub.s32 1, %s4
  %s7 = scalar_select 0, %s6, %s4
  $region1: #{tpu_custom_call.1} parent=0
    #allocation2 [shape = 'u8[512]{0}', space=smem, size = 0x200, scoped, tag = 'input window, operand 0, single buffered']
    #allocation3 [shape = 's32[1]{0}', space=sflag, size = 0x4, scoped, tag = 'scoped memory for tpu_custom_call.1']
    #allocation4 [shape = 's32[1]{0}', space=sflag, size = 0x4, scoped, tag = 'scoped memory for tpu_custom_call.1']
    #allocation5 [shape = 's32[1]{0}', space=sflag, size = 0x4, scoped, tag = 'scoped memory for tpu_custom_call.1']
    #allocation6 [shape = 'u8[16384]{0}', space=vmem, size = 0x4000, scoped, tag = 'input window, operand 1, single buffered']
    #allocation7 [shape = 'u8[16384]{0}', space=vmem, size = 0x4000, scoped, tag = 'input window, operand 2, single buffered']
    #allocation8 [shape = 's32[1]{0}', space=sflag, size = 0x4, scoped, tag = 'scoped memory for tpu_custom_call.1']
    #allocation9 [shape = 'u8[16384]{0}', space=vmem, size = 0x4000, scoped, tag = 'output window, operand 0, single buffered']
    %8 = vsyncpa [#allocation5], 0
    %9 = vsyncpa [#allocation3], 0
    %10 = vsyncpa [#allocation8], 0
    %11 = vsyncpa [#allocation4], 0
    // Predicated region
    $region2: #{tpu_custom_call.1} parent=1 // pred_check
      _
    $region3: #{tpu_custom_call.1} parent=1 // pred_check_branch
      %13 = sbr.rel (0) target = $region5
    $region4: #{tpu_custom_call.1} parent=1 // pred_region
      %s15 = ssub.s32 16, 16
      %16 = vsyncadd [#allocation5], %s15
      %19 = dma.hbm_to_smem %s0, 16, [#allocation2], [#allocation5]
    $region5: #{tpu_custom_call.1} parent=1 // pred_fallthru
      _
    // Predicated region
    $region6: #{tpu_custom_call.1} parent=1 // pred_check
      _
    $region7: #{tpu_custom_call.1} parent=1 // pred_check_branch
      %21 = sbr.rel (0) target = $region9
    $region8: #{tpu_custom_call.1} parent=1 // pred_region
      %s23 = ssub.s32 512, 512
      %24 = vsyncadd [#allocation3], %s23
      %s26 = sshll.u32 [#allocation6], 4
      %s27 = int_to_ptr.vmem [resolvable:$true] %s26
      %29 = dma.hbm_to_vmem [thread:$0]  %s1, 512, %s27, [#allocation3]
    $region9: #{tpu_custom_call.1} parent=1 // pred_fallthru
      _
    // Predicated region
    $region10: #{tpu_custom_call.1} parent=1 // pred_check
      _
    $region11: #{tpu_custom_call.1} parent=1 // pred_check_branch
      %31 = sbr.rel (0) target = $region13
    $region12: #{tpu_custom_call.1} parent=1 // pred_region
      %s33 = ssub.s32 512, 512
      %34 = vsyncadd [#allocation8], %s33
      %s36 = sshll.u32 [#allocation7], 4
      %s37 = int_to_ptr.vmem [resolvable:$true] %s36
      %39 = dma.hbm_to_vmem [thread:$0]  %s2, 512, %s37, [#allocation8]
    $region13: #{tpu_custom_call.1} parent=1 // pred_fallthru
      _
    // Predicated region
    $region14: #{tpu_custom_call.1} parent=1 // pred_check
      _
    $region15: #{tpu_custom_call.1} parent=1 // pred_check_branch
      %41 = sbr.rel (0) target = $region17
    $region16: #{tpu_custom_call.1} parent=1 // pred_region
      %42 = dma.done [#allocation5], 16
    $region17: #{tpu_custom_call.1} parent=1 // pred_fallthru
      _
    // Predicated region
    $region18: #{tpu_custom_call.1} parent=1 // pred_check
      _
    $region19: #{tpu_custom_call.1} parent=1 // pred_check_branch
      %44 = sbr.rel (0) target = $region21
    $region20: #{tpu_custom_call.1} parent=1 // pred_region
      %45 = dma.done [#allocation3], 512
    $region21: #{tpu_custom_call.1} parent=1 // pred_fallthru
      _
    // Predicated region
    $region22: #{tpu_custom_call.1} parent=1 // pred_check
      _
    $region23: #{tpu_custom_call.1} parent=1 // pred_check_branch
      %47 = sbr.rel (0) target = $region25
    $region24: #{tpu_custom_call.1} parent=1 // pred_region
      %48 = dma.done [#allocation8], 512
    $region25: #{tpu_custom_call.1} parent=1 // pred_fallthru
      _
    %49 = sfence
    %s50 = sld [smem:[#allocation2]]
    %v51 = vld [vmem:[#allocation6] sm:$0xff]
    %v52 = vld [vmem:[#allocation6 + $0x8] sm:$0xff]
    %v53 = vld [vmem:[#allocation6 + $0x10] sm:$0xff]
    %v54 = vld [vmem:[#allocation6 + $0x18] sm:$0xff]
    %v55 = vstv %s50
    %v56 = vmul.f32 %v55, %v51
    %v57 = vmul.f32 %v55, %v52
    %v58 = vmul.f32 %v55, %v53
    %v59 = vmul.f32 %v55, %v54
    %s60 = sld [smem:[#allocation2 + $0x1]]
    %v61 = vld [vmem:[#allocation7] sm:$0xff]
    %v62 = vld [vmem:[#allocation7 + $0x8] sm:$0xff]
    %v63 = vld [vmem:[#allocation7 + $0x10] sm:$0xff]
    %v64 = vld [vmem:[#allocation7 + $0x18] sm:$0xff]
    %v65 = vstv %s60
    %v66 = vmul.f32 %v65, %v61
    %v67 = vmul.f32 %v65, %v62
    %v68 = vmul.f32 %v65, %v63
    %v69 = vmul.f32 %v65, %v64
    %v70 = vadd.f32 %v56, %v66
    %v71 = vadd.f32 %v57, %v67
    %v72 = vadd.f32 %v58, %v68
    %v73 = vadd.f32 %v59, %v69
    %74 = vst [vmem:[#allocation9] sm:$0xff] %v70
    %75 = vst [vmem:[#allocation9 + $0x8] sm:$0xff] %v71
    %76 = vst [vmem:[#allocation9 + $0x10] sm:$0xff] %v72
    %77 = vst [vmem:[#allocation9 + $0x18] sm:$0xff] %v73
    // Predicated region
    $region26: #{tpu_custom_call.1} parent=1 // pred_check
      _
    $region27: #{tpu_custom_call.1} parent=1 // pred_check_branch
      %79 = sbr.rel (0) target = $region29
    $region28: #{tpu_custom_call.1} parent=1 // pred_region
      %s81 = ssub.s32 512, 512
      %82 = vsyncadd [#allocation4], %s81
      %s84 = sshll.u32 [#allocation9], 4
      %s85 = int_to_ptr.vmem [resolvable:$true] %s84
      %87 = dma.vmem_to_hbm [thread:$0]  %s85, 512, %s3, [#allocation4]
    $region29: #{tpu_custom_call.1} parent=1 // pred_fallthru
      _
    // Predicated region
    $region30: #{tpu_custom_call.1} parent=1 // pred_check
      _
    $region31: #{tpu_custom_call.1} parent=1 // pred_check_branch
      %89 = sbr.rel (0) target = $region33
    $region32: #{tpu_custom_call.1} parent=1 // pred_region
      %90 = dma.done [#allocation4], 512
    $region33: #{tpu_custom_call.1} parent=1 // pred_fallthru
      _
    %91 = vsyncpa [#allocation3], 1
    %92 = vsyncpa [#allocation8], 1
    %93 = vsyncpa [#allocation4], 1
    %94 = vsyncpa [#allocation5], 1

</llo_original>
